<compile_context>
chip_gen: v5e
topology: v5e:2x2
jax: 0.10.0
libtpu: 0.0.40
codegen_flags: <defaults>
</compile_context>

<pallas_src>
import functools

import jax
import jax.numpy as jnp
from jax.experimental import pallas as pl
from jax.experimental.pallas import tpu as pltpu

_LANES = 128


def _corr_moments_kernel(p_ref, t_ref, o_ref,
                         sp_ref, st_ref, spt_ref, spp_ref, stt_ref,
                         *, eps, n_elems):
    """Grid = (batch_blocks, sample_chunks).  Per step: (TB, CR, 128) tile of each input.

    Accumulates per-sample raw moments into (TB, 128) VMEM scratch across the chunk
    axis, finalizes the Pearson correlation on the last chunk, and writes TB losses.
    """
    j = pl.program_id(1)
    n_chunks = pl.num_programs(1)

    p = p_ref[...].astype(jnp.float32)   # (TB, CR, 128)
    t = t_ref[...].astype(jnp.float32)

    @pl.when(j == 0)
    def _init():
        sp_ref[...] = jnp.zeros_like(sp_ref)
        st_ref[...] = jnp.zeros_like(st_ref)
        spt_ref[...] = jnp.zeros_like(spt_ref)
        spp_ref[...] = jnp.zeros_like(spp_ref)
        stt_ref[...] = jnp.zeros_like(stt_ref)

    # Single pass over the tile; reduce only the chunk-row axis, keep the 128-lane
    # axis so the (expensive) cross-lane reduction happens once per sample.
    sp_ref[...] += jnp.sum(p, axis=1)
    st_ref[...] += jnp.sum(t, axis=1)
    spt_ref[...] += jnp.sum(p * t, axis=1)
    spp_ref[...] += jnp.sum(p * p, axis=1)
    stt_ref[...] += jnp.sum(t * t, axis=1)

    @pl.when(j == n_chunks - 1)
    def _finalize():
        n = jnp.float32(n_elems)
        s_p = jnp.sum(sp_ref[...], axis=1, keepdims=True)    # (TB, 1)
        s_t = jnp.sum(st_ref[...], axis=1, keepdims=True)
        s_pt = jnp.sum(spt_ref[...], axis=1, keepdims=True)
        s_pp = jnp.sum(spp_ref[...], axis=1, keepdims=True)
        s_tt = jnp.sum(stt_ref[...], axis=1, keepdims=True)

        numerator = s_pt - s_p * s_t / n
        var_p = s_pp - s_p * s_p / n
        var_t = s_tt - s_t * s_t / n
        denom = jnp.sqrt(var_p * var_t) + eps
        # Division happens only TB times per kernel (not per element), so an exact
        # divide is used to keep bit-accuracy vs. the reference.
        loss = 1.0 - numerator / denom                        # (TB, 1)
        o_ref[...] = loss[None]                               # (1, TB, 1)


def correlation_loss(pred, target, eps=1e-8):
    """pred, target: (B, 2, NBPMS, NTURNS) (any trailing shape works) -> scalar f32."""
    assert pred.shape == target.shape
    B = int(pred.shape[0])
    n_elems = 1
    for d in pred.shape[1:]:
        n_elems *= int(d)

    itemsize = jnp.dtype(pred.dtype).itemsize
    rows = pl.cdiv(n_elems, _LANES)                 # 128-lane rows per flattened sample

    # VMEM budget: 2 inputs x 2 pipeline buffers x tile <= ~8 MiB. Keeps the 2-deep
    # pipeline alive within v5e's 16 MiB default scoped VMEM and v7x's smaller VMEM.
    budget_bytes = 8 * 1024 * 1024
    bytes_per_row = _LANES * itemsize * 4           # 2 inputs * 2 buffers
    max_rows_per_step = max(8, budget_bytes // bytes_per_row)

    if rows <= max_rows_per_step:
        chunk_rows = rows                                        # whole sample per step
        tb = max(1, min(B, max_rows_per_step // max(rows, 1), 128))  # samples per step
    else:
        tb = 1
        chunk_rows = (max_rows_per_step // 8) * 8                # sublane-aligned chunk

    n_chunks = pl.cdiv(rows, chunk_rows)
    rows_p = n_chunks * chunk_rows                  # padded rows per sample
    n_batch_blocks = pl.cdiv(B, tb)
    batch_p = n_batch_blocks * tb                   # padded batch

    # Zero padding is exact for the raw-moment formulation (zeros add nothing to the
    # sums and we divide by the true n). Padded batch entries are trimmed afterwards.
    def _prep(x):
        x = x.reshape(B, n_elems)
        x = jnp.pad(x, ((0, batch_p - B), (0, rows_p * _LANES - n_elems)))
        return x.reshape(batch_p, rows_p, _LANES)

    p3 = _prep(pred)
    t3 = _prep(target)

    kernel = functools.partial(_corr_moments_kernel, eps=float(eps), n_elems=n_elems)

    losses = pl.pallas_call(
        kernel,
        out_shape=jax.ShapeDtypeStruct((n_batch_blocks, tb, 1), jnp.float32),
        grid_spec=pltpu.PrefetchScalarGridSpec(
            num_scalar_prefetch=0,
            grid=(n_batch_blocks, n_chunks),
            in_specs=[
                pl.BlockSpec((tb, chunk_rows, _LANES), lambda i, j: (i, j, 0)),
                pl.BlockSpec((tb, chunk_rows, _LANES), lambda i, j: (i, j, 0)),
            ],
            out_specs=pl.BlockSpec((1, tb, 1), lambda i, j: (i, 0, 0)),
            scratch_shapes=[pltpu.VMEM((tb, _LANES), jnp.float32)] * 5,
        ),
        compiler_params=pltpu.CompilerParams(
            # Per-sample losses -> no cross-batch accumulator -> batch axis can be
            # parallel (uses both TensorCores on v7x); chunk axis is the reduction.
            dimension_semantics=("parallel", "arbitrary"),
        ),
    )(p3, t3)

    losses = losses.reshape(batch_p)[:B]
    return jnp.mean(losses)


def _reference_loss(pred, target, eps=1e-8):
    B = pred.shape[0]
    p = pred.reshape(B, -1).astype(jnp.float32)
    t = target.reshape(B, -1).astype(jnp.float32)
    p_c = p - p.mean(axis=1, keepdims=True)
    t_c = t - t.mean(axis=1, keepdims=True)
    num = (p_c * t_c).sum(axis=1)
    den = jnp.sqrt((p_c ** 2).sum(axis=1) * (t_c ** 2).sum(axis=1)) + eps
    return jnp.mean(1.0 - num / den)


if __name__ == "__main__":
    key = jax.random.PRNGKey(0)
    k1, k2 = jax.random.split(key)
    B, C, NBPMS, NTURNS = 2, 2, 16, 16  # pred/target: (B, 2, NBPMS, NTURNS)
    pred = jax.random.normal(k1, (B, C, NBPMS, NTURNS), dtype=jnp.float32)
    # make target correlated-but-noisy so corr is nontrivial
    target = 0.7 * pred + 0.3 * jax.random.normal(k2, (B, C, NBPMS, NTURNS), dtype=jnp.float32)

    loss = correlation_loss(pred, target)
    loss = jax.block_until_ready(loss)

    ref = _reference_loss(pred, target)
    assert jnp.allclose(loss, ref, atol=1e-5, rtol=1e-5), (loss, ref)
    print("KERNEL_OK")
</pallas_src>

<mosaic_0001>
module attributes {stable_mosaic.version = 11 : i64} {
  func.func @_corr_moments_kernel(%arg0: i32, %arg1: i32, %arg2: memref<2x4x128xf32, #tpu.memory_space<vmem>>, %arg3: memref<2x4x128xf32, #tpu.memory_space<vmem>>, %arg4: memref<1x2x1xf32, #tpu.memory_space<vmem>>, %arg5: memref<2x128xf32, #tpu.memory_space<vmem>>, %arg6: memref<2x128xf32, #tpu.memory_space<vmem>>, %arg7: memref<2x128xf32, #tpu.memory_space<vmem>>, %arg8: memref<2x128xf32, #tpu.memory_space<vmem>>, %arg9: memref<2x128xf32, #tpu.memory_space<vmem>>) attributes {dimension_semantics = [#tpu.dimension_semantics<parallel>, #tpu.dimension_semantics<arbitrary>], iteration_bounds = array<i64: 1, 1>, scalar_prefetch = 0 : i64, scratch_operands = 5 : i64, tpu.core_type = #tpu.core_type<tc>, window_params = [{transform_indices = @transform_0, window_bounds = array<i64: 2, 4, 128>}, {transform_indices = @transform_1, window_bounds = array<i64: 2, 4, 128>}, {transform_indices = @transform_2, window_bounds = array<i64: 1, 2, 1>}]} {
    %c0 = arith.constant 0 : index
    %c0_0 = arith.constant 0 : index
    %c0_1 = arith.constant 0 : index
    %0 = vector.load %arg2[%c0, %c0_0, %c0_1] : memref<2x4x128xf32, #tpu.memory_space<vmem>>, vector<2x4x128xf32>
    %c0_2 = arith.constant 0 : index
    %c0_3 = arith.constant 0 : index
    %c0_4 = arith.constant 0 : index
    %1 = vector.load %arg3[%c0_2, %c0_3, %c0_4] : memref<2x4x128xf32, #tpu.memory_space<vmem>>, vector<2x4x128xf32>
    %c0_i32 = arith.constant 0 : i32
    %2 = arith.cmpi eq, %arg1, %c0_i32 : i32
    %3 = arith.extui %2 : i1 to i32
    %c0_i32_5 = arith.constant 0 : i32
    %4 = arith.cmpi ne, %3, %c0_i32_5 : i32
    scf.if %4 {
      %cst_32 = arith.constant 0.000000e+00 : f32
      %31 = vector.broadcast %cst_32 : f32 to vector<2x128xf32>
      %c0_33 = arith.constant 0 : index
      %c0_34 = arith.constant 0 : index
      %32 = vector.load %arg5[%c0_33, %c0_34] : memref<2x128xf32, #tpu.memory_space<vmem>>, vector<2x128xf32>
      tpu.vector_store %arg5[%c0_33, %c0_34], %31 {strides = array<i32>} : memref<2x128xf32, #tpu.memory_space<vmem>>, vector<2x128xf32>,
      %cst_35 = arith.constant 0.000000e+00 : f32
      %33 = vector.broadcast %cst_35 : f32 to vector<2x128xf32>
      %c0_36 = arith.constant 0 : index
      %c0_37 = arith.constant 0 : index
      %34 = vector.load %arg6[%c0_36, %c0_37] : memref<2x128xf32, #tpu.memory_space<vmem>>, vector<2x128xf32>
      tpu.vector_store %arg6[%c0_36, %c0_37], %33 {strides = array<i32>} : memref<2x128xf32, #tpu.memory_space<vmem>>, vector<2x128xf32>,
      %cst_38 = arith.constant 0.000000e+00 : f32
      %35 = vector.broadcast %cst_38 : f32 to vector<2x128xf32>
      %c0_39 = arith.constant 0 : index
      %c0_40 = arith.constant 0 : index
      %36 = vector.load %arg7[%c0_39, %c0_40] : memref<2x128xf32, #tpu.memory_space<vmem>>, vector<2x128xf32>
      tpu.vector_store %arg7[%c0_39, %c0_40], %35 {strides = array<i32>} : memref<2x128xf32, #tpu.memory_space<vmem>>, vector<2x128xf32>,
      %cst_41 = arith.constant 0.000000e+00 : f32
      %37 = vector.broadcast %cst_41 : f32 to vector<2x128xf32>
      %c0_42 = arith.constant 0 : index
      %c0_43 = arith.constant 0 : index
      %38 = vector.load %arg8[%c0_42, %c0_43] : memref<2x128xf32, #tpu.memory_space<vmem>>, vector<2x128xf32>
      tpu.vector_store %arg8[%c0_42, %c0_43], %37 {strides = array<i32>} : memref<2x128xf32, #tpu.memory_space<vmem>>, vector<2x128xf32>,
      %cst_44 = arith.constant 0.000000e+00 : f32
      %39 = vector.broadcast %cst_44 : f32 to vector<2x128xf32>
      %c0_45 = arith.constant 0 : index
      %c0_46 = arith.constant 0 : index
      %40 = vector.load %arg9[%c0_45, %c0_46] : memref<2x128xf32, #tpu.memory_space<vmem>>, vector<2x128xf32>
      tpu.vector_store %arg9[%c0_45, %c0_46], %39 {strides = array<i32>} : memref<2x128xf32, #tpu.memory_space<vmem>>, vector<2x128xf32>,
    } else {
    }
    %c0_6 = arith.constant 0 : index
    %c0_7 = arith.constant 0 : index
    %5 = vector.load %arg5[%c0_6, %c0_7] : memref<2x128xf32, #tpu.memory_space<vmem>>, vector<2x128xf32>
    %cst = arith.constant dense<0.000000e+00> : vector<2x128xf32>
    %6 = vector.multi_reduction <add>, %0, %cst [1] : vector<2x4x128xf32> to vector<2x128xf32>
    %7 = arith.addf %5, %6 : vector<2x128xf32>
    %c0_8 = arith.constant 0 : index
    %c0_9 = arith.constant 0 : index
    %8 = vector.load %arg5[%c0_8, %c0_9] : memref<2x128xf32, #tpu.memory_space<vmem>>, vector<2x128xf32>
    tpu.vector_store %arg5[%c0_8, %c0_9], %7 {strides = array<i32>} : memref<2x128xf32, #tpu.memory_space<vmem>>, vector<2x128xf32>,
    %c0_10 = arith.constant 0 : index
    %c0_11 = arith.constant 0 : index
    %9 = vector.load %arg6[%c0_10, %c0_11] : memref<2x128xf32, #tpu.memory_space<vmem>>, vector<2x128xf32>
    %cst_12 = arith.constant dense<0.000000e+00> : vector<2x128xf32>
    %10 = vector.multi_reduction <add>, %1, %cst_12 [1] : vector<2x4x128xf32> to vector<2x128xf32>
    %11 = arith.addf %9, %10 : vector<2x128xf32>
    %c0_13 = arith.constant 0 : index
    %c0_14 = arith.constant 0 : index
    %12 = vector.load %arg6[%c0_13, %c0_14] : memref<2x128xf32, #tpu.memory_space<vmem>>, vector<2x128xf32>
    tpu.vector_store %arg6[%c0_13, %c0_14], %11 {strides = array<i32>} : memref<2x128xf32, #tpu.memory_space<vmem>>, vector<2x128xf32>,
    %c0_15 = arith.constant 0 : index
    %c0_16 = arith.constant 0 : index
    %13 = vector.load %arg7[%c0_15, %c0_16] : memref<2x128xf32, #tpu.memory_space<vmem>>, vector<2x128xf32>
    %14 = arith.mulf %0, %1 : vector<2x4x128xf32>
    %cst_17 = arith.constant dense<0.000000e+00> : vector<2x128xf32>
    %15 = vector.multi_reduction <add>, %14, %cst_17 [1] : vector<2x4x128xf32> to vector<2x128xf32>
    %16 = arith.addf %13, %15 : vector<2x128xf32>
    %c0_18 = arith.constant 0 : index
    %c0_19 = arith.constant 0 : index
    %17 = vector.load %arg7[%c0_18, %c0_19] : memref<2x128xf32, #tpu.memory_space<vmem>>, vector<2x128xf32>
    tpu.vector_store %arg7[%c0_18, %c0_19], %16 {strides = array<i32>} : memref<2x128xf32, #tpu.memory_space<vmem>>, vector<2x128xf32>,
    %c0_20 = arith.constant 0 : index
    %c0_21 = arith.constant 0 : index
    %18 = vector.load %arg8[%c0_20, %c0_21] : memref<2x128xf32, #tpu.memory_space<vmem>>, vector<2x128xf32>
    %19 = arith.mulf %0, %0 : vector<2x4x128xf32>
    %cst_22 = arith.constant dense<0.000000e+00> : vector<2x128xf32>
    %20 = vector.multi_reduction <add>, %19, %cst_22 [1] : vector<2x4x128xf32> to vector<2x128xf32>
    %21 = arith.addf %18, %20 : vector<2x128xf32>
    %c0_23 = arith.constant 0 : index
    %c0_24 = arith.constant 0 : index
    %22 = vector.load %arg8[%c0_23, %c0_24] : memref<2x128xf32, #tpu.memory_space<vmem>>, vector<2x128xf32>
    tpu.vector_store %arg8[%c0_23, %c0_24], %21 {strides = array<i32>} : memref<2x128xf32, #tpu.memory_space<vmem>>, vector<2x128xf32>,
    %c0_25 = arith.constant 0 : index
    %c0_26 = arith.constant 0 : index
    %23 = vector.load %arg9[%c0_25, %c0_26] : memref<2x128xf32, #tpu.memory_space<vmem>>, vector<2x128xf32>
    %24 = arith.mulf %1, %1 : vector<2x4x128xf32>
    %cst_27 = arith.constant dense<0.000000e+00> : vector<2x128xf32>
    %25 = vector.multi_reduction <add>, %24, %cst_27 [1] : vector<2x4x128xf32> to vector<2x128xf32>
    %26 = arith.addf %23, %25 : vector<2x128xf32>
    %c0_28 = arith.constant 0 : index
    %c0_29 = arith.constant 0 : index
    %27 = vector.load %arg9[%c0_28, %c0_29] : memref<2x128xf32, #tpu.memory_space<vmem>>, vector<2x128xf32>
    tpu.vector_store %arg9[%c0_28, %c0_29], %26 {strides = array<i32>} : memref<2x128xf32, #tpu.memory_space<vmem>>, vector<2x128xf32>,
    %c0_i32_30 = arith.constant 0 : i32
    %28 = arith.cmpi eq, %arg1, %c0_i32_30 : i32
    %29 = arith.extui %28 : i1 to i32
    %c0_i32_31 = arith.constant 0 : i32
    %30 = arith.cmpi ne, %29, %c0_i32_31 : i32
    scf.if %30 {
      %c0_32 = arith.constant 0 : index
      %c0_33 = arith.constant 0 : index
      %31 = vector.load %arg5[%c0_32, %c0_33] : memref<2x128xf32, #tpu.memory_space<vmem>>, vector<2x128xf32>
      %cst_34 = arith.constant dense<0.000000e+00> : vector<2xf32>
      %32 = vector.multi_reduction <add>, %31, %cst_34 [1] : vector<2x128xf32> to vector<2xf32>
      %33 = vector.shape_cast %32 : vector<2xf32> to vector<2x1xf32>
      %c0_35 = arith.constant 0 : index
      %c0_36 = arith.constant 0 : index
      %34 = vector.load %arg6[%c0_35, %c0_36] : memref<2x128xf32, #tpu.memory_space<vmem>>, vector<2x128xf32>
      %cst_37 = arith.constant dense<0.000000e+00> : vector<2xf32>
      %35 = vector.multi_reduction <add>, %34, %cst_37 [1] : vector<2x128xf32> to vector<2xf32>
      %36 = vector.shape_cast %35 : vector<2xf32> to vector<2x1xf32>
      %c0_38 = arith.constant 0 : index
      %c0_39 = arith.constant 0 : index
      %37 = vector.load %arg7[%c0_38, %c0_39] : memref<2x128xf32, #tpu.memory_space<vmem>>, vector<2x128xf32>
      %cst_40 = arith.constant dense<0.000000e+00> : vector<2xf32>
      %38 = vector.multi_reduction <add>, %37, %cst_40 [1] : vector<2x128xf32> to vector<2xf32>
      %39 = vector.shape_cast %38 : vector<2xf32> to vector<2x1xf32>
      %c0_41 = arith.constant 0 : index
      %c0_42 = arith.constant 0 : index
      %40 = vector.load %arg8[%c0_41, %c0_42] : memref<2x128xf32, #tpu.memory_space<vmem>>, vector<2x128xf32>
      %cst_43 = arith.constant dense<0.000000e+00> : vector<2xf32>
      %41 = vector.multi_reduction <add>, %40, %cst_43 [1] : vector<2x128xf32> to vector<2xf32>
      %42 = vector.shape_cast %41 : vector<2xf32> to vector<2x1xf32>
      %c0_44 = arith.constant 0 : index
      %c0_45 = arith.constant 0 : index
      %43 = vector.load %arg9[%c0_44, %c0_45] : memref<2x128xf32, #tpu.memory_space<vmem>>, vector<2x128xf32>
      %cst_46 = arith.constant dense<0.000000e+00> : vector<2xf32>
      %44 = vector.multi_reduction <add>, %43, %cst_46 [1] : vector<2x128xf32> to vector<2xf32>
      %45 = vector.shape_cast %44 : vector<2xf32> to vector<2x1xf32>
      %46 = arith.mulf %33, %36 : vector<2x1xf32>
      %cst_47 = arith.constant 5.120000e+02 : f32
      %47 = vector.broadcast %cst_47 : f32 to vector<2x1xf32>
      %48 = arith.divf %46, %47 : vector<2x1xf32>
      %49 = arith.subf %39, %48 : vector<2x1xf32>
      %50 = arith.mulf %33, %33 : vector<2x1xf32>
      %cst_48 = arith.constant 5.120000e+02 : f32
      %51 = vector.broadcast %cst_48 : f32 to vector<2x1xf32>
      %52 = arith.divf %50, %51 : vector<2x1xf32>
      %53 = arith.subf %42, %52 : vector<2x1xf32>
      %54 = arith.mulf %36, %36 : vector<2x1xf32>
      %cst_49 = arith.constant 5.120000e+02 : f32
      %55 = vector.broadcast %cst_49 : f32 to vector<2x1xf32>
      %56 = arith.divf %54, %55 : vector<2x1xf32>
      %57 = arith.subf %45, %56 : vector<2x1xf32>
      %58 = arith.mulf %53, %57 : vector<2x1xf32>
      %59 = math.sqrt %58 : vector<2x1xf32>
      %cst_50 = arith.constant 9.99999993E-9 : f32
      %60 = vector.broadcast %cst_50 : f32 to vector<2x1xf32>
      %61 = arith.addf %59, %60 : vector<2x1xf32>
      %62 = arith.divf %49, %61 : vector<2x1xf32>
      %cst_51 = arith.constant 1.000000e+00 : f32
      %63 = vector.broadcast %cst_51 : f32 to vector<2x1xf32>
      %64 = arith.subf %63, %62 : vector<2x1xf32>
      %65 = vector.shape_cast %64 : vector<2x1xf32> to vector<1x2x1xf32>
      %c0_52 = arith.constant 0 : index
      %c0_53 = arith.constant 0 : index
      %c0_54 = arith.constant 0 : index
      %66 = vector.load %arg4[%c0_52, %c0_53, %c0_54] : memref<1x2x1xf32, #tpu.memory_space<vmem>>, vector<1x2x1xf32>
      tpu.vector_store %arg4[%c0_52, %c0_53, %c0_54], %65 {strides = array<i32>} : memref<1x2x1xf32, #tpu.memory_space<vmem>>, vector<1x2x1xf32>,
    } else {
    }
    return
  }
  func.func @transform_0(%arg0: i32, %arg1: i32) -> (i32, i32, i32) {
    %c0_i32 = arith.constant 0 : i32
    %c0_i32_0 = arith.constant 0 : i32
    return %arg0, %arg1, %c0_i32 : i32, i32, i32
  }
  func.func @transform_1(%arg0: i32, %arg1: i32) -> (i32, i32, i32) {
    %c0_i32 = arith.constant 0 : i32
    %c0_i32_0 = arith.constant 0 : i32
    return %arg0, %arg1, %c0_i32 : i32, i32, i32
  }
  func.func @transform_2(%arg0: i32, %arg1: i32) -> (i32, i32, i32) {
    %c0_i32 = arith.constant 0 : i32
    %c0_i32_0 = arith.constant 0 : i32
    %c0_i32_1 = arith.constant 0 : i32
    return %arg0, %c0_i32, %c0_i32_0 : i32, i32, i32
  }
}

</mosaic_0001>

<llo_original>
// kernel: tpu_custom_call.1
$region0: #{tpu_custom_call.1}
  #allocation0 [shape = 'u32[]', space=smem, size = 0x4, offset = 0x4, fixed_abs, tag = 'smem constant byte address 0x4 - core index']
  #allocation1 [shape = 'u32[72,128]{1,0:T(1,128)}', space=vmem, size = 0x9000, scoped, tag = 'internal scratch']
  #allocation2 [shape = 'f32[2,128]{1,0:T(2,128)}', space=vmem, size = 0x400, scoped, tag = 'scratch operand']
  #allocation3 [shape = 'f32[2,128]{1,0:T(2,128)}', space=vmem, size = 0x400, scoped, tag = 'scratch operand']
  #allocation4 [shape = 'f32[2,128]{1,0:T(2,128)}', space=vmem, size = 0x400, scoped, tag = 'scratch operand']
  #allocation5 [shape = 'f32[2,128]{1,0:T(2,128)}', space=vmem, size = 0x400, scoped, tag = 'scratch operand']
  #allocation6 [shape = 'f32[2,128]{1,0:T(2,128)}', space=vmem, size = 0x400, scoped, tag = 'scratch operand']
  %s0 = inlined_call_operand.hbm [shape: f32[2,4,128], index: 0, kind: input, shape index: {}]
  %s1 = inlined_call_operand.hbm [shape: f32[2,4,128], index: 1, kind: input, shape index: {}]
  %s2 = inlined_call_operand.vmem [shape: f32[1,2,1], index: 2, kind: output, shape index: {}]
  %s3 = sld [smem:[#allocation0]]
  $region34: #{tpu_custom_call.1} parent=0
    _
  %s5 = ssub.s32 1, %s3
  %s6 = scalar_select 0, %s5, %s3
  $region1: #{tpu_custom_call.1} parent=0
    #allocation7 [shape = 'u8[4096]{0}', space=vmem, size = 0x1000, scoped, tag = 'input window, operand 0, single buffered']
    #allocation8 [shape = 's32[1]{0}', space=sflag, size = 0x4, scoped, tag = 'scoped memory for tpu_custom_call.1']
    #allocation9 [shape = 'u8[4096]{0}', space=vmem, size = 0x1000, scoped, tag = 'input window, operand 1, single buffered']
    #allocation10 [shape = 's32[1]{0}', space=sflag, size = 0x4, scoped, tag = 'scoped memory for tpu_custom_call.1']
    %7 = vsyncpa [#allocation8], 0
    %8 = vsyncpa [#allocation10], 0
    // Predicated region
    $region2: #{tpu_custom_call.1} parent=1 // pred_check
      _
    $region3: #{tpu_custom_call.1} parent=1 // pred_check_branch
      %10 = sbr.rel (0) target = $region5
    $region4: #{tpu_custom_call.1} parent=1 // pred_region
      %12 = vsyncadd [#allocation8], 0
      %s13 = sshll.u32 %s0, 4
      %s14 = int_to_ptr.hbm [resolvable:$true] %s13
      %s15 = sshll.u32 [#allocation7], 4
      %s16 = int_to_ptr.vmem [resolvable:$true] %s15
      %21 = dma.hbm_to_vmem [thread:$0]  %s14, 128, %s16, [#allocation8], 64, 64, 4
    $region5: #{tpu_custom_call.1} parent=1 // pred_fallthru
      _
    // Predicated region
    $region6: #{tpu_custom_call.1} parent=1 // pred_check
      _
    $region7: #{tpu_custom_call.1} parent=1 // pred_check_branch
      %23 = sbr.rel (0) target = $region9
    $region8: #{tpu_custom_call.1} parent=1 // pred_region
      %25 = vsyncadd [#allocation10], 0
      %s26 = sshll.u32 %s1, 4
      %s27 = int_to_ptr.hbm [resolvable:$true] %s26
      %s28 = sshll.u32 [#allocation9], 4
      %s29 = int_to_ptr.vmem [resolvable:$true] %s28
      %34 = dma.hbm_to_vmem [thread:$0]  %s27, 128, %s29, [#allocation10], 64, 64, 4
    $region9: #{tpu_custom_call.1} parent=1 // pred_fallthru
      _
    // Predicated region
    $region10: #{tpu_custom_call.1} parent=1 // pred_check
      _
    $region11: #{tpu_custom_call.1} parent=1 // pred_check_branch
      %36 = sbr.rel (0) target = $region13
    $region12: #{tpu_custom_call.1} parent=1 // pred_region
      %38 = dma.done [#allocation8], 128
    $region13: #{tpu_custom_call.1} parent=1 // pred_fallthru
      _
    // Predicated region
    $region14: #{tpu_custom_call.1} parent=1 // pred_check
      _
    $region15: #{tpu_custom_call.1} parent=1 // pred_check_branch
      %40 = sbr.rel (0) target = $region17
    $region16: #{tpu_custom_call.1} parent=1 // pred_region
      %42 = dma.done [#allocation10], 128
    $region17: #{tpu_custom_call.1} parent=1 // pred_fallthru
      _
    %v43 = vld [vmem:[#allocation7] sm:$0xf]
    %v44 = vld [vmem:[#allocation7 + $0x4] sm:$0xf]
    %v45 = vld [vmem:[#allocation9] sm:$0xf]
    %v46 = vld [vmem:[#allocation9 + $0x4] sm:$0xf]
    %p47 = scmp.eq.s32.totalorder 0, 0
    // Predicated region
    $region18: #{tpu_custom_call.1} parent=1 // pred_check
      %p48 = pneg %p47
    $region19: #{tpu_custom_call.1} parent=1 // pred_check_branch
      %50 = sbr.rel (%p48) target = $region21
    $region20: #{tpu_custom_call.1} parent=1 // pred_region
      %51 = vst [vmem:[#allocation2] sm:$0x3] 0.0
      %52 = vst [vmem:[#allocation3] sm:$0x3] 0.0
      %53 = vst [vmem:[#allocation4] sm:$0x3] 0.0
      %54 = vst [vmem:[#allocation5] sm:$0x3] 0.0
      %55 = vst [vmem:[#allocation6] sm:$0x3] 0.0
    $region21: #{tpu_custom_call.1} parent=1 // pred_fallthru
      _
    %v56 = vld [vmem:[#allocation2] sm:$0x3]
    %vm57 = vcmask 1043456
    %v58 = vsel %vm57, %v43, 0.0
    %v59 = vrot.slane %v58, 4
    %v60 = vadd.f32 %v58, %v59
    %v61 = vrot.slane %v60, 2
    %v62 = vadd.f32 %v60, %v61
    %v63 = vrot.slane %v62, 1
    %v64 = vadd.f32 %v62, %v63
    %v65 = vsel %vm57, %v44, 0.0
    %v66 = vrot.slane %v65, 4
    %v67 = vadd.f32 %v65, %v66
    %v68 = vrot.slane %v67, 2
    %v69 = vadd.f32 %v67, %v68
    %v70 = vrot.slane %v69, 1
    %v71 = vadd.f32 %v69, %v70
    %vm74 = vcmask 1041409
    %v75 = vsel %vm74, %v71, %v64
    %v77 = vadd.f32 %v56, %v75
    %78 = vst [vmem:[#allocation2] sm:$0x3] %v77
    %v79 = vld [vmem:[#allocation3] sm:$0x3]
    %v80 = vsel %vm57, %v45, 0.0
    %v81 = vrot.slane %v80, 4
    %v82 = vadd.f32 %v80, %v81
    %v83 = vrot.slane %v82, 2
    %v84 = vadd.f32 %v82, %v83
    %v85 = vrot.slane %v84, 1
    %v86 = vadd.f32 %v84, %v85
    %v87 = vsel %vm57, %v46, 0.0
    %v88 = vrot.slane %v87, 4
    %v89 = vadd.f32 %v87, %v88
    %v90 = vrot.slane %v89, 2
    %v91 = vadd.f32 %v89, %v90
    %v92 = vrot.slane %v91, 1
    %v93 = vadd.f32 %v91, %v92
    %v96 = vsel %vm74, %v93, %v86
    %v98 = vadd.f32 %v79, %v96
    %99 = vst [vmem:[#allocation3] sm:$0x3] %v98
    %v100 = vld [vmem:[#allocation4] sm:$0x3]
    %v101 = vmul.f32 %v43, %v45
    %v102 = vmul.f32 %v44, %v46
    %v103 = vsel %vm57, %v101, 0.0
    %v104 = vrot.slane %v103, 4
    %v105 = vadd.f32 %v103, %v104
    %v106 = vrot.slane %v105, 2
    %v107 = vadd.f32 %v105, %v106
    %v108 = vrot.slane %v107, 1
    %v109 = vadd.f32 %v107, %v108
    %v110 = vsel %vm57, %v102, 0.0
    %v111 = vrot.slane %v110, 4
    %v112 = vadd.f32 %v110, %v111
    %v113 = vrot.slane %v112, 2
    %v114 = vadd.f32 %v112, %v113
    %v115 = vrot.slane %v114, 1
    %v116 = vadd.f32 %v114, %v115
    %v119 = vsel %vm74, %v116, %v109
    %v121 = vadd.f32 %v100, %v119
    %122 = vst [vmem:[#allocation4] sm:$0x3] %v121
    %v123 = vld [vmem:[#allocation5] sm:$0x3]
    %v124 = vmul.f32 %v43, %v43
    %v125 = vmul.f32 %v44, %v44
    %v126 = vsel %vm57, %v124, 0.0
    %v127 = vrot.slane %v126, 4
    %v128 = vadd.f32 %v126, %v127
    %v129 = vrot.slane %v128, 2
    %v130 = vadd.f32 %v128, %v129
    %v131 = vrot.slane %v130, 1
    %v132 = vadd.f32 %v130, %v131
    %v133 = vsel %vm57, %v125, 0.0
    %v134 = vrot.slane %v133, 4
    %v135 = vadd.f32 %v133, %v134
    %v136 = vrot.slane %v135, 2
    %v137 = vadd.f32 %v135, %v136
    %v138 = vrot.slane %v137, 1
    %v139 = vadd.f32 %v137, %v138
    %v142 = vsel %vm74, %v139, %v132
    %v144 = vadd.f32 %v123, %v142
    %145 = vst [vmem:[#allocation5] sm:$0x3] %v144
    %v146 = vld [vmem:[#allocation6] sm:$0x3]
    %v147 = vmul.f32 %v45, %v45
    %v148 = vmul.f32 %v46, %v46
    %v149 = vsel %vm57, %v147, 0.0
    %v150 = vrot.slane %v149, 4
    %v151 = vadd.f32 %v149, %v150
    %v152 = vrot.slane %v151, 2
    %v153 = vadd.f32 %v151, %v152
    %v154 = vrot.slane %v153, 1
    %v155 = vadd.f32 %v153, %v154
    %v156 = vsel %vm57, %v148, 0.0
    %v157 = vrot.slane %v156, 4
    %v158 = vadd.f32 %v156, %v157
    %v159 = vrot.slane %v158, 2
    %v160 = vadd.f32 %v158, %v159
    %v161 = vrot.slane %v160, 1
    %v162 = vadd.f32 %v160, %v161
    %v165 = vsel %vm74, %v162, %v155
    %v167 = vadd.f32 %v146, %v165
    %168 = vst [vmem:[#allocation6] sm:$0x3] %v167
    // Predicated region
    $region22: #{tpu_custom_call.1} parent=1 // pred_check
      %p169 = pneg %p47
    $region23: #{tpu_custom_call.1} parent=1 // pred_check_branch
      %171 = sbr.rel (%p169) target = $region25
    $region24: #{tpu_custom_call.1} parent=1 // pred_region
      %v172 = vld [vmem:[#allocation2] sm:$0x3]
      %vm173 = vcmask 1041408
      %v174 = vsel %vm173, %v172, 0.0
      %175 = vadd.xlane.f32.xlu0 %v174
      %v176 = vpop.xlane.xlu0 %175
      %v177 = vld [vmem:[#allocation3] sm:$0x3]
      %v178 = vsel %vm173, %v177, 0.0
      %179 = vadd.xlane.f32.xlu0 %v178
      %v180 = vpop.xlane.xlu0 %179
      %v181 = vld [vmem:[#allocation4] sm:$0x3]
      %v182 = vsel %vm173, %v181, 0.0
      %183 = vadd.xlane.f32.xlu0 %v182
      %v184 = vpop.xlane.xlu0 %183
      %v185 = vld [vmem:[#allocation5] sm:$0x3]
      %v186 = vsel %vm173, %v185, 0.0
      %187 = vadd.xlane.f32.xlu0 %v186
      %v188 = vpop.xlane.xlu0 %187
      %v189 = vld [vmem:[#allocation6] sm:$0x3]
      %v190 = vsel %vm173, %v189, 0.0
      %191 = vadd.xlane.f32.xlu0 %v190
      %v192 = vpop.xlane.xlu0 %191
      %v193 = vmul.f32 %v176, %v180
      %v194 = vrcp.pop 512.0
      %v195 = vmul.f32 512.0, %v194
      %v196 = vsub.f32 1.0, %v195
      %v197 = vmul.f32 %v194, %v196
      %v198 = vadd.f32 %v194, %v197
      %vm199 = vweird.f32 %v194
      %v200 = vsel %vm199, %v194, %v198
      %v201 = vmul.f32 %v193, %v200
      %v202 = vsub.f32 %v184, %v201
      %v203 = vmul.f32 %v176, %v176
      %v204 = vmul.f32 %v203, %v200
      %v205 = vsub.f32 %v188, %v204
      %v206 = vmul.f32 %v180, %v180
      %v207 = vmul.f32 %v206, %v200
      %v208 = vsub.f32 %v192, %v207
      %v209 = vmul.f32 %v205, %v208
      %v210 = vrsqrt.pop %v209
      %v211 = vmul.f32 %v210, %v209
      %v212 = vmul.f32 %v211, %v210
      %v213 = vmul.f32 0.5, %v212
      %v214 = vsub.f32 1.5, %v213
      %v215 = vmul.f32 %v210, %v214
      %v216 = vmul.f32 %v209, %v215
      %vm217 = vcmp.eq.f32.partialorder %v209, inf
      %v218 = vsel %vm217, %v209, %v216
      %vm219 = vcmp.eq.f32.partialorder %v209, 0.0
      %v220 = vand.u32 %v209, 2147483648
      %v221 = vsel %vm219, %v220, %v218
      %v222 = vadd.f32 %v221, 1e-08
      %v223 = vrcp.pop %v222
      %v224 = vmul.f32 %v222, %v223
      %v225 = vsub.f32 1.0, %v224
      %v226 = vmul.f32 %v223, %v225
      %v227 = vadd.f32 %v223, %v226
      %vm228 = vweird.f32 %v222
      %vm229 = vweird.f32 %v223
      %vm230 = vmor %vm228, %vm229
      %v231 = vsel %vm230, %v223, %v227
      %v232 = vand.u32 2147483647, %v222
      %vm233 = vcmp.eq.f32.partialorder %v232, 8.507059e+37
      %v234 = vand.u32 %v222, 2147483648
      %v235 = vor.u32 1.1754944e-38, %v234
      %v236 = vsel %vm233, %v235, %v231
      %v237 = vmul.f32 %v202, %v236
      %v238 = vsub.f32 1.0, %v237
      %vm239 = vcmask 1024
      %240 = vst.msk [vmem:[%s2] sm:$0x3] %vm239, %v238
    $region25: #{tpu_custom_call.1} parent=1 // pred_fallthru
      _
    // Predicated region
    $region26: #{tpu_custom_call.1} parent=1 // pred_check
      _
    $region27: #{tpu_custom_call.1} parent=1 // pred_check_branch
      %242 = sbr.rel (0) target = $region29
    $region28: #{tpu_custom_call.1} parent=1 // pred_region
      _
    $region29: #{tpu_custom_call.1} parent=1 // pred_fallthru
      _
    // Predicated region
    $region30: #{tpu_custom_call.1} parent=1 // pred_check
      _
    $region31: #{tpu_custom_call.1} parent=1 // pred_check_branch
      %244 = sbr.rel (0) target = $region33
    $region32: #{tpu_custom_call.1} parent=1 // pred_region
      _
    $region33: #{tpu_custom_call.1} parent=1 // pred_fallthru
      _
    %245 = vsyncpa [#allocation8], 1
    %246 = vsyncpa [#allocation10], 1

</llo_original>
